<compile_context>
chip_gen: v7x
topology: tpu7x:2x2x1
jax: 0.10.0
libtpu: 0.0.40
codegen_flags: <defaults>
</compile_context>

<pallas_src>
import functools
from typing import NamedTuple

import jax
import jax.numpy as jnp
from jax.experimental import pallas as pl
from jax.experimental.pallas import tpu as pltpu

NUM_CLASSES = 50


# ---------------------------------------------------------------------------
# Small helpers.
# ---------------------------------------------------------------------------
def _round_up(x, m):
    return (x + m - 1) // m * m


def _sublane_multiple(dtype):
    # Sub-32-bit dtypes pack along sublanes: round the row tile accordingly.
    return {4: 8, 2: 16, 1: 32}.get(jnp.dtype(dtype).itemsize, 8)


def _largest_dividing_multiple(total, unit, cap):
    """Largest multiple of `unit` that divides `total` and is <= cap (>= unit)."""
    best = unit
    t = unit
    while t <= cap:
        if total % t == 0:
            best = t
        t += unit
    return best


def _device_caps():
    try:
        kind = jax.devices()[0].device_kind.lower()
    except Exception:  # pragma: no cover - defensive
        kind = ""
    if "v7" in kind:
        # v7x: 64 MiB VMEM / TensorCore -> conservative tiles, but 2 TCs to feed.
        return dict(tm=256, tk=512, tn=256, vmem=40 << 20, split_cores=True)
    if "v6" in kind or "v5" in kind:
        # v5e / v6e: 128 MiB physical VMEM -> bigger tiles, raise scoped limit.
        return dict(tm=512, tk=1024, tn=512, vmem=80 << 20, split_cores=False)
    # Unknown generation: stay conservative.
    return dict(tm=256, tk=512, tn=256, vmem=40 << 20, split_cores=False)


def _kn_tiles(K, N, caps):
    """Pick (tk, Kp, tn, Np) from the feature dims only (independent of batch)."""
    # Contraction: a block dim equal to the full array dim is always legal, so a
    # small Fin (e.g. 32) needs no padding and runs as a single K step.
    if K <= caps["tk"]:
        tk, Kp = K, K
    else:
        Kp = _round_up(K, 128)
        tk = _largest_dividing_multiple(Kp, 128, caps["tk"])
    # Output columns: lane-dense (>=128) tiles -> unmasked stores.
    Np = _round_up(N, 128)
    tn = Np if Np <= caps["tn"] else _largest_dividing_multiple(Np, 128, caps["tn"])
    return tk, Kp, tn, Np


def _m_tile(B, dtype, caps):
    sub = _sublane_multiple(dtype)
    Mp = _round_up(B, sub)
    if Mp <= caps["tm"]:
        tm = Mp
    else:
        tm = caps["tm"]
        Mp = _round_up(B, tm)
    return tm, Mp


def _compiler_params(tm, tk, tn, itemsize, caps, single_k):
    semantics = (("parallel", "parallel") if single_k
                 else ("parallel", "parallel", "arbitrary"))
    # Double-buffered x / w / bias / out tiles (+ f32 accumulator if multi-K).
    budget = 2 * (tm * tk + tk * tn + 8 * tn + tm * tn) * itemsize
    if not single_k:
        budget += tm * tn * 4
    vmem_limit = int(min(max(2 * budget, 16 << 20), caps["vmem"]))
    return pltpu.CompilerParams(dimension_semantics=semantics,
                                vmem_limit_bytes=vmem_limit)


def _cost(Mp, Kp, Np, itemsize):
    return pl.CostEstimate(
        flops=2 * Mp * Kp * Np,
        transcendentals=0,
        bytes_accessed=(Mp * Kp + Kp * Np + Np + Mp * Np) * itemsize)


# ---------------------------------------------------------------------------
# Kernel bodies.  Weights are pre-transposed to (Fin, Fout): MXU-lane-native.
# ---------------------------------------------------------------------------
def _matmul_bias_kernel(x_ref, w_ref, b_ref, o_ref):
    # Single-K fast path: whole contraction in one step, no scratch accumulator.
    o_ref[...] = (jnp.dot(x_ref[...], w_ref[...],
                          preferred_element_type=jnp.float32)
                  + b_ref[...]).astype(o_ref.dtype)


def _matmul_bias_acc_kernel(x_ref, w_ref, b_ref, o_ref, acc_ref):
    k = pl.program_id(2)

    @pl.when(k == 0)
    def _():
        acc_ref[...] = jnp.zeros_like(acc_ref)

    acc_ref[...] += jnp.dot(x_ref[...], w_ref[...],
                            preferred_element_type=jnp.float32)

    @pl.when(k == pl.num_programs(2) - 1)
    def _():
        o_ref[...] = (acc_ref[...] + b_ref[...]).astype(o_ref.dtype)


def _mh_matmul_bias_kernel(idx_ref, x_ref, w_ref, b_ref, o_ref):
    del idx_ref  # consumed by index_maps only
    _matmul_bias_kernel(x_ref, w_ref, b_ref, o_ref)


def _mh_matmul_bias_acc_kernel(idx_ref, x_ref, w_ref, b_ref, o_ref, acc_ref):
    del idx_ref
    _matmul_bias_acc_kernel(x_ref, w_ref, b_ref, o_ref, acc_ref)


# ---------------------------------------------------------------------------
# One-time parameter preparation (layout + padding hoisted out of the call path).
# ---------------------------------------------------------------------------
class LinearParams(NamedTuple):
    wt: jax.Array        # (Kp, Np)  pre-transposed (Fin, Fout), zero-padded
    b2: jax.Array        # (1, Np)
    fin: int
    fout: int
    tk: int
    tn: int


class MultiHeadLinearParams(NamedTuple):
    wt_bank: jax.Array   # (H, Kp, Np)
    b_bank: jax.Array    # (H, 1, Np)
    fin: int
    fout: int
    tk: int
    tn: int


def prepare_linear_params(w, b, compute_dtype=None):
    """PyTorch layout w (Fout, Fin), b (Fout,) -> padded kernel layout, once."""
    Fout, Fin = w.shape
    dtype = jnp.dtype(compute_dtype) if compute_dtype is not None else w.dtype
    caps = _device_caps()
    tk, Kp, tn, Np = _kn_tiles(Fin, Fout, caps)
    wt = jnp.pad(w.T.astype(dtype), ((0, Kp - Fin), (0, Np - Fout)))
    b2 = jnp.pad(b.astype(dtype), (0, Np - Fout)).reshape(1, Np)
    return LinearParams(jax.device_put(wt), jax.device_put(b2),
                        Fin, Fout, tk, tn)


def prepare_multihead_params(w_bank, b_bank, compute_dtype=None):
    """Bank w (H, Fout, Fin), b (H, Fout) -> padded (H, Fin_p, Fout_p), once."""
    H, Fout, Fin = w_bank.shape
    dtype = jnp.dtype(compute_dtype) if compute_dtype is not None else w_bank.dtype
    caps = _device_caps()
    tk, Kp, tn, Np = _kn_tiles(Fin, Fout, caps)
    wt_bank = jnp.pad(jnp.swapaxes(w_bank, 1, 2).astype(dtype),
                      ((0, 0), (0, Kp - Fin), (0, Np - Fout)))
    b_pad = jnp.pad(b_bank.astype(dtype), ((0, 0), (0, Np - Fout))).reshape(H, 1, Np)
    return MultiHeadLinearParams(jax.device_put(wt_bank), jax.device_put(b_pad),
                                 Fin, Fout, tk, tn)


# ---------------------------------------------------------------------------
# Forward passes.
# ---------------------------------------------------------------------------
def _call_geometry(B, params_wt_shape, tk, tn, dtype, caps):
    Kp, Np = params_wt_shape[-2], params_wt_shape[-1]
    tm, Mp = _m_tile(B, dtype, caps)
    sub = _sublane_multiple(dtype)
    # v7x: make sure at least one "parallel" axis has >= 2 blocks so the second
    # TensorCore gets work (only when that is possible without masked stores).
    if caps["split_cores"] and Mp // tm == 1 and Np // tn == 1:
        if Np >= 256:
            tn = _largest_dividing_multiple(Np, 128, Np // 2)
        elif Mp >= 2 * sub:
            tm = _largest_dividing_multiple(Mp, sub, Mp // 2)
    return tm, Mp, tk, Kp, tn, Np


def linear_forward(params: LinearParams, x):
    """Single-head forward: y = x @ W.T + b (weights pre-prepared)."""
    B, Fin = x.shape
    assert Fin == params.fin, "feature-dim mismatch"
    caps = _device_caps()
    dtype = params.wt.dtype
    tm, Mp, tk, Kp, tn, Np = _call_geometry(B, params.wt.shape,
                                            params.tk, params.tn, dtype, caps)

    xp = x.astype(dtype)
    if (Mp, Kp) != (B, Fin):
        xp = jnp.pad(xp, ((0, Mp - B), (0, Kp - Fin)))

    itemsize = jnp.dtype(dtype).itemsize
    n_k = Kp // tk
    cost = _cost(Mp, Kp, Np, itemsize)

    if n_k == 1:
        out = pl.pallas_call(
            _matmul_bias_kernel,
            out_shape=jax.ShapeDtypeStruct((Mp, Np), dtype),
            grid_spec=pltpu.PrefetchScalarGridSpec(
                num_scalar_prefetch=0,
                grid=(Mp // tm, Np // tn),
                in_specs=[
                    pl.BlockSpec((tm, Kp), lambda i, j: (i, 0)),
                    pl.BlockSpec((Kp, tn), lambda i, j: (0, j)),
                    pl.BlockSpec((1, tn), lambda i, j: (0, j)),
                ],
                out_specs=pl.BlockSpec((tm, tn), lambda i, j: (i, j))),
            compiler_params=_compiler_params(tm, Kp, tn, itemsize, caps, True),
            cost_estimate=cost,
        )(xp, params.wt, params.b2)
    else:
        out = pl.pallas_call(
            _matmul_bias_acc_kernel,
            out_shape=jax.ShapeDtypeStruct((Mp, Np), dtype),
            grid_spec=pltpu.PrefetchScalarGridSpec(
                num_scalar_prefetch=0,
                grid=(Mp // tm, Np // tn, n_k),
                in_specs=[
                    pl.BlockSpec((tm, tk), lambda i, j, k: (i, k)),
                    pl.BlockSpec((tk, tn), lambda i, j, k: (k, j)),
                    pl.BlockSpec((1, tn), lambda i, j, k: (0, j)),
                ],
                out_specs=pl.BlockSpec((tm, tn), lambda i, j, k: (i, j)),
                scratch_shapes=[pltpu.VMEM((tm, tn), jnp.float32)]),
            compiler_params=_compiler_params(tm, tk, tn, itemsize, caps, False),
            cost_estimate=cost,
        )(xp, params.wt, params.b2)
    return out[:B, :params.fout]


def linear_multihead_forward(params: MultiHeadLinearParams, x, idx):
    """Multi-head forward using scalar-prefetch head selection over a prepared bank.

    Only the selected head's weight/bias tiles are DMA'd; the bank itself was
    laid out and padded once at preparation time.
    """
    B, Fin = x.shape
    assert Fin == params.fin, "feature-dim mismatch"
    caps = _device_caps()
    dtype = params.wt_bank.dtype
    H = params.wt_bank.shape[0]
    tm, Mp, tk, Kp, tn, Np = _call_geometry(B, params.wt_bank.shape,
                                            params.tk, params.tn, dtype, caps)

    xp = x.astype(dtype)
    if (Mp, Kp) != (B, Fin):
        xp = jnp.pad(xp, ((0, Mp - B), (0, Kp - Fin)))
    idx_arr = jnp.clip(jnp.asarray(idx, jnp.int32), 0, H - 1).reshape((1,))

    itemsize = jnp.dtype(dtype).itemsize
    n_k = Kp // tk
    cost = _cost(Mp, Kp, Np, itemsize)   # per-call traffic: one head only

    if n_k == 1:
        out = pl.pallas_call(
            _mh_matmul_bias_kernel,
            out_shape=jax.ShapeDtypeStruct((Mp, Np), dtype),
            grid_spec=pltpu.PrefetchScalarGridSpec(
                num_scalar_prefetch=1,
                grid=(Mp // tm, Np // tn),
                in_specs=[
                    pl.BlockSpec((tm, Kp), lambda i, j, idx_ref: (i, 0)),
                    pl.BlockSpec((None, Kp, tn),
                                 lambda i, j, idx_ref: (idx_ref[0], 0, j)),
                    pl.BlockSpec((None, 1, tn),
                                 lambda i, j, idx_ref: (idx_ref[0], 0, j)),
                ],
                out_specs=pl.BlockSpec((tm, tn), lambda i, j, idx_ref: (i, j))),
            compiler_params=_compiler_params(tm, Kp, tn, itemsize, caps, True),
            cost_estimate=cost,
        )(idx_arr, xp, params.wt_bank, params.b_bank)
    else:
        out = pl.pallas_call(
            _mh_matmul_bias_acc_kernel,
            out_shape=jax.ShapeDtypeStruct((Mp, Np), dtype),
            grid_spec=pltpu.PrefetchScalarGridSpec(
                num_scalar_prefetch=1,
                grid=(Mp // tm, Np // tn, n_k),
                in_specs=[
                    pl.BlockSpec((tm, tk), lambda i, j, k, idx_ref: (i, k)),
                    pl.BlockSpec((None, tk, tn),
                                 lambda i, j, k, idx_ref: (idx_ref[0], k, j)),
                    pl.BlockSpec((None, 1, tn),
                                 lambda i, j, k, idx_ref: (idx_ref[0], 0, j)),
                ],
                out_specs=pl.BlockSpec((tm, tn), lambda i, j, k, idx_ref: (i, j)),
                scratch_shapes=[pltpu.VMEM((tm, tn), jnp.float32)]),
            compiler_params=_compiler_params(tm, tk, tn, itemsize, caps, False),
            cost_estimate=cost,
        )(idx_arr, xp, params.wt_bank, params.b_bank)
    return out[:B, :params.fout]


# ---------------------------------------------------------------------------
# Deterministic init mirroring nn.Linear's default bound 1/sqrt(fan_in).
# ---------------------------------------------------------------------------
def init_linear_params(key, num_features_in, num_features_out, dtype=jnp.float32):
    kw, kb = jax.random.split(key)
    bound = 1.0 / jnp.sqrt(jnp.asarray(num_features_in, jnp.float32))
    w = jax.random.uniform(kw, (num_features_out, num_features_in),
                           dtype=dtype, minval=-bound, maxval=bound)
    b = jax.random.uniform(kb, (num_features_out,),
                           dtype=dtype, minval=-bound, maxval=bound)
    return w, b


if __name__ == "__main__":
    key = jax.random.PRNGKey(0)
    k_x, k_p = jax.random.split(key)

    B, F_IN, F_OUT = 8, 32, 64
    x = jax.random.normal(k_x, (B, F_IN), dtype=jnp.float32)
    w, b = init_linear_params(k_p, F_IN, F_OUT)

    # --- single-head mode (multi_head=False): layout prep happens ONCE ---
    single_params = prepare_linear_params(w, b)
    y_single = linear_forward(single_params, x)
    jax.block_until_ready(y_single)

    # --- multi-head mode (multi_head=True) ---
    # The PyTorch ModuleList is `[_linear_factory()] * NUM_CLASSES`, so every head
    # shares ONE parameter set -> recommended path is the shared single-head kernel:
    y_multi_shared = linear_forward(single_params, x)

    # Generic bank path (for genuinely distinct heads): bank prepared ONCE, head
    # selected via scalar prefetch (only that head's tiles are DMA'd). idx=3.
    w_bank = jnp.broadcast_to(w[None], (NUM_CLASSES, F_OUT, F_IN))
    b_bank = jnp.broadcast_to(b[None], (NUM_CLASSES, F_OUT))
    multi_params = prepare_multihead_params(w_bank, b_bank)
    y_multi_bank = linear_multihead_forward(multi_params, x, 3)
    jax.block_until_ready(y_multi_bank)

    # quiet correctness checks against plain-JAX reference
    y_ref = x @ w.T + b
    assert jnp.allclose(y_single, y_ref, atol=1e-5, rtol=1e-5)
    assert jnp.allclose(y_multi_shared, y_ref, atol=1e-5, rtol=1e-5)
    assert jnp.allclose(y_multi_bank, y_ref, atol=1e-5, rtol=1e-5)

    print("KERNEL_OK")
</pallas_src>

<mosaic_0001>
module attributes {stable_mosaic.version = 11 : i64} {
  func.func @_matmul_bias_kernel(%arg0: i32, %arg1: i32, %arg2: memref<8x32xf32, #tpu.memory_space<vmem>>, %arg3: memref<32x128xf32, #tpu.memory_space<vmem>>, %arg4: memref<1x128xf32, #tpu.memory_space<vmem>>, %arg5: memref<8x128xf32, #tpu.memory_space<vmem>>) attributes {dimension_semantics = [#tpu.dimension_semantics<parallel>, #tpu.dimension_semantics<parallel>], iteration_bounds = array<i64: 1, 1>, scalar_prefetch = 0 : i64, scratch_operands = 0 : i64, tpu.core_type = #tpu.core_type<tc>, window_params = [{transform_indices = @transform_0, window_bounds = array<i64: 8, 32>}, {transform_indices = @transform_1, window_bounds = array<i64: 32, 128>}, {transform_indices = @transform_2, window_bounds = array<i64: 1, 128>}, {transform_indices = @transform_3, window_bounds = array<i64: 8, 128>}]} {
    %c0 = arith.constant 0 : index
    %c0_0 = arith.constant 0 : index
    %0 = vector.load %arg2[%c0, %c0_0] : memref<8x32xf32, #tpu.memory_space<vmem>>, vector<8x32xf32>
    %c0_1 = arith.constant 0 : index
    %c0_2 = arith.constant 0 : index
    %1 = vector.load %arg3[%c0_1, %c0_2] : memref<32x128xf32, #tpu.memory_space<vmem>>, vector<32x128xf32>
    %cst = arith.constant dense<0.000000e+00> : vector<8x128xf32>
    %2 = tpu.matmul %0, %1, %cst {dimension_numbers = #tpu.dot_dimension_numbers<[1], [0], [0], [1], [0, 0, 1, 1], [], []>} : vector<8x32xf32>, vector<32x128xf32>, vector<8x128xf32> -> vector<8x128xf32>
    %c0_3 = arith.constant 0 : index
    %c0_4 = arith.constant 0 : index
    %3 = vector.load %arg4[%c0_3, %c0_4] : memref<1x128xf32, #tpu.memory_space<vmem>>, vector<1x128xf32>
    %4 = vector.broadcast %3 : vector<1x128xf32> to vector<8x128xf32>
    %5 = arith.addf %2, %4 : vector<8x128xf32>
    %c0_5 = arith.constant 0 : index
    %c0_6 = arith.constant 0 : index
    %6 = vector.load %arg5[%c0_5, %c0_6] : memref<8x128xf32, #tpu.memory_space<vmem>>, vector<8x128xf32>
    tpu.vector_store %arg5[%c0_5, %c0_6], %5 {strides = array<i32>} : memref<8x128xf32, #tpu.memory_space<vmem>>, vector<8x128xf32>,
    return
  }
  func.func @transform_0(%arg0: i32, %arg1: i32) -> (i32, i32) {
    %c0_i32 = arith.constant 0 : i32
    %c0_i32_0 = arith.constant 0 : i32
    return %arg0, %c0_i32 : i32, i32
  }
  func.func @transform_1(%arg0: i32, %arg1: i32) -> (i32, i32) {
    %c0_i32 = arith.constant 0 : i32
    %c0_i32_0 = arith.constant 0 : i32
    return %c0_i32, %arg1 : i32, i32
  }
  func.func @transform_2(%arg0: i32, %arg1: i32) -> (i32, i32) {
    %c0_i32 = arith.constant 0 : i32
    %c0_i32_0 = arith.constant 0 : i32
    return %c0_i32, %arg1 : i32, i32
  }
  func.func @transform_3(%arg0: i32, %arg1: i32) -> (i32, i32) {
    %c0_i32 = arith.constant 0 : i32
    return %arg0, %arg1 : i32, i32
  }
}

</mosaic_0001>

<llo_original>
// kernel: tpu_custom_call.1
$region0: #{tpu_custom_call.1}
  #allocation0 [shape = 'u32[]', space=smem, size = 0x4, offset = 0x4, fixed_abs, tag = 'smem constant byte address 0x4 - core index']
  #allocation1 [shape = 'u32[144,128]{1,0:T(1,128)}', space=vmem, size = 0x12000, scoped, tag = 'internal scratch']
  %s0 = inlined_call_operand.hbm [shape: f32[8,32], index: 0, kind: input, shape index: {}]
  %s1 = inlined_call_operand.hbm [shape: f32[32,128], index: 1, kind: input, shape index: {}]
  %s2 = inlined_call_operand.vmem [shape: f32[1,128], index: 2, kind: input, shape index: {}]
  %s3 = inlined_call_operand.hbm [shape: f32[8,128], index: 3, kind: output, shape index: {}]
  %s4 = sld [smem:[#allocation0]]
  $region30: #{tpu_custom_call.1} parent=0
    _
  %s6 = ssub.s32 1, %s4
  %s7 = scalar_select 0, %s6, %s4
  $region1: #{tpu_custom_call.1} parent=0
    #allocation2 [shape = 'u8[4096]{0}', space=vmem, size = 0x1000, scoped, tag = 'input window, operand 0, single buffered']
    #allocation3 [shape = 's32[1]{0}', space=sflag, size = 0x4, scoped, tag = 'scoped memory for tpu_custom_call.1']
    #allocation4 [shape = 's32[1]{0}', space=sflag, size = 0x4, scoped, tag = 'scoped memory for tpu_custom_call.1']
    #allocation5 [shape = 'u8[16384]{0}', space=vmem, size = 0x4000, scoped, tag = 'input window, operand 1, single buffered']
    #allocation6 [shape = 's32[1]{0}', space=sflag, size = 0x4, scoped, tag = 'scoped memory for tpu_custom_call.1']
    #allocation7 [shape = 'u8[4096]{0}', space=vmem, size = 0x1000, scoped, tag = 'output window, operand 0, single buffered']
    %8 = vsyncpa [#allocation3], 0
    %9 = vsyncpa [#allocation6], 0
    %10 = vsyncpa [#allocation4], 0
    // Predicated region
    $region2: #{tpu_custom_call.1} parent=1 // pred_check
      _
    $region3: #{tpu_custom_call.1} parent=1 // pred_check_branch
      %12 = sbr.rel (0) target = $region5
    $region4: #{tpu_custom_call.1} parent=1 // pred_region
      %s14 = ssub.s32 128, 128
      %15 = vsyncadd [#allocation3], %s14
      %s17 = sshll.u32 [#allocation2], 4
      %s18 = int_to_ptr.vmem [resolvable:$true] %s17
      %20 = dma.hbm_to_vmem [thread:$0]  %s0, 128, %s18, [#allocation3]
    $region5: #{tpu_custom_call.1} parent=1 // pred_fallthru
      _
    // Predicated region
    $region6: #{tpu_custom_call.1} parent=1 // pred_check
      _
    $region7: #{tpu_custom_call.1} parent=1 // pred_check_branch
      %22 = sbr.rel (0) target = $region9
    $region8: #{tpu_custom_call.1} parent=1 // pred_region
      %s24 = ssub.s32 512, 512
      %25 = vsyncadd [#allocation6], %s24
      %s26 = sshll.u32 [#allocation5], 4
      %s27 = int_to_ptr.vmem [resolvable:$true] %s26
      %32 = dma.hbm_to_vmem [thread:$0]  %s1, 512, %s27, [#allocation6], 128, 128, 8
    $region9: #{tpu_custom_call.1} parent=1 // pred_fallthru
      _
    // Predicated region
    $region10: #{tpu_custom_call.1} parent=1 // pred_check
      _
    $region11: #{tpu_custom_call.1} parent=1 // pred_check_branch
      %34 = sbr.rel (0) target = $region13
    $region12: #{tpu_custom_call.1} parent=1 // pred_region
      _
    $region13: #{tpu_custom_call.1} parent=1 // pred_fallthru
      _
    // Predicated region
    $region14: #{tpu_custom_call.1} parent=1 // pred_check
      _
    $region15: #{tpu_custom_call.1} parent=1 // pred_check_branch
      %36 = sbr.rel (0) target = $region17
    $region16: #{tpu_custom_call.1} parent=1 // pred_region
      %37 = dma.done [#allocation3], 128
    $region17: #{tpu_custom_call.1} parent=1 // pred_fallthru
      _
    // Predicated region
    $region18: #{tpu_custom_call.1} parent=1 // pred_check
      _
    $region19: #{tpu_custom_call.1} parent=1 // pred_check_branch
      %39 = sbr.rel (0) target = $region21
    $region20: #{tpu_custom_call.1} parent=1 // pred_region
      %40 = dma.done [#allocation6], 512
    $region21: #{tpu_custom_call.1} parent=1 // pred_fallthru
      _
    %v41 = vld [vmem:[#allocation2] sm:$0xff]
    %v42 = vld [vmem:[#allocation5] sm:$0xff]
    %v43 = vld [vmem:[#allocation5 + $0x8] sm:$0xff]
    %v44 = vld [vmem:[#allocation5 + $0x10] sm:$0xff]
    %v45 = vld [vmem:[#allocation5 + $0x18] sm:$0xff]
    %v46 = vld [vmem:[%s2] sm:$0x1]
    %v48 = vlaneseq
    %v49 = vshrl.u32 %v48, 7
    %v50 = vsub.s32 0, %v49
    %v51 = vrot.slane %v46, %v50
    %vm53 = vcmask 261120
    %v55 = vsel %vm53, %v41, 0
    %57 = vmatprep.subr.mxu0 0.0
    %58 = vmatpush1.msra.mxu0 %v42
    %59 = vmatprep.subr.mxu0 0.0
    %60 = vmatpush1.msra.mxu0 %v43
    %61 = vmatprep.subr.mxu0 0.0
    %62 = vmatpush1.msra.mxu0 %v44
    %63 = vmatprep.subr.mxu0 0.0
    %64 = vmatpush1.msra.mxu0 %v45
    %65 = vmatprep.subr.mxu0 0.0
    %66 = vmatpush1.msra.mxu0 0.0
    %67 = vmatprep.subr.mxu0 0.0
    %68 = vmatpush1.msra.mxu0 0.0
    %69 = vmatprep.subr.mxu0 0.0
    %70 = vmatpush1.msra.mxu0 0.0
    %71 = vmatprep.subr.mxu0 0.0
    %72 = vmatpush1.msra.mxu0 0.0
    %73 = vmatprep.subr.mxu0 0.0
    %74 = vmatpush1.msra.mxu0 0.0
    %75 = vmatprep.subr.mxu0 0.0
    %76 = vmatpush1.msra.mxu0 0.0
    %77 = vmatprep.subr.mxu0 0.0
    %78 = vmatpush1.msra.mxu0 0.0
    %79 = vmatprep.subr.mxu0 0.0
    %80 = vmatpush1.msra.mxu0 0.0
    %81 = vmatprep.subr.mxu0 0.0
    %82 = vmatpush1.msra.mxu0 0.0
    %83 = vmatprep.subr.mxu0 0.0
    %84 = vmatpush1.msra.mxu0 0.0
    %85 = vmatprep.subr.mxu0 0.0
    %86 = vmatpush1.msra.mxu0 0.0
    %87 = vmatprep.subr.mxu0 0.0
    %88 = vmatpush1.msra.mxu0 0.0
    %89 = vmatprep.subr.mxu0 0.0
    %90 = vmatpush1.msra.mxu0 0.0
    %91 = vmatprep.subr.mxu0 0.0
    %92 = vmatpush1.msra.mxu0 0.0
    %93 = vmatprep.subr.mxu0 0.0
    %94 = vmatpush1.msra.mxu0 0.0
    %95 = vmatprep.subr.mxu0 0.0
    %96 = vmatpush1.msra.mxu0 0.0
    %97 = vmatprep.subr.mxu0 0.0
    %98 = vmatpush1.msra.mxu0 0.0
    %99 = vmatprep.subr.mxu0 0.0
    %100 = vmatpush1.msra.mxu0 0.0
    %101 = vmatprep.subr.mxu0 0.0
    %102 = vmatpush1.msra.mxu0 0.0
    %103 = vmatprep.subr.mxu0 0.0
    %104 = vmatpush1.msra.mxu0 0.0
    %105 = vmatprep.subr.mxu0 0.0
    %106 = vmatpush1.msra.mxu0 0.0
    %107 = vmatprep.subr.mxu0 0.0
    %108 = vmatpush1.msra.mxu0 0.0
    %109 = vmatprep.subr.mxu0 0.0
    %110 = vmatpush1.msra.mxu0 0.0
    %111 = vmatprep.subr.mxu0 0.0
    %112 = vmatpush1.msra.mxu0 0.0
    %113 = vmatprep.subr.mxu0 0.0
    %114 = vmatpush1.msra.mxu0 0.0
    %115 = vmatprep.subr.mxu0 0.0
    %116 = vmatpush1.msra.mxu0 0.0
    %117 = vmatprep.subr.mxu0 0.0
    %118 = vmatpush1.msra.mxu0 0.0
    %119 = vmatprep.subr.mxu0 0.0
    %120 = vmatpush1.msra.mxu0 0.0
    %121 = vmatprep.mubr.f32.mxu0 0.0
    %122 = vmatmul.mubr.f32.gmra.mrb[0].mxu0 %v55
    %v123 = vpop.f32.mrb[0].mxu0
    %v124 = vadd.f32 %v51, %v123
    %v125 = vpop.f32.mrb[0].mxu0
    %126 = vdwg.mxu0
    %127 = vst [vmem:[#allocation7] sm:$0xff] %v124
    // Predicated region
    $region22: #{tpu_custom_call.1} parent=1 // pred_check
      _
    $region23: #{tpu_custom_call.1} parent=1 // pred_check_branch
      %129 = sbr.rel (0) target = $region25
    $region24: #{tpu_custom_call.1} parent=1 // pred_region
      %s131 = ssub.s32 128, 128
      %132 = vsyncadd [#allocation4], %s131
      %s134 = sshll.u32 [#allocation7], 4
      %s135 = int_to_ptr.vmem [resolvable:$true] %s134
      %137 = dma.vmem_to_hbm [thread:$0]  %s135, 128, %s3, [#allocation4]
    $region25: #{tpu_custom_call.1} parent=1 // pred_fallthru
      _
    // Predicated region
    $region26: #{tpu_custom_call.1} parent=1 // pred_check
      _
    $region27: #{tpu_custom_call.1} parent=1 // pred_check_branch
      %139 = sbr.rel (0) target = $region29
    $region28: #{tpu_custom_call.1} parent=1 // pred_region
      %140 = dma.done [#allocation4], 128
    $region29: #{tpu_custom_call.1} parent=1 // pred_fallthru
      _
    %141 = vsyncpa [#allocation3], 1
    %142 = vsyncpa [#allocation6], 1
    %143 = vsyncpa [#allocation4], 1

</llo_original>
